<compile_context>
chip_gen: v6e
topology: v6e:2x2x1
jax: 0.10.0
libtpu: 0.0.40
codegen_flags: <defaults>
</compile_context>

<pallas_src>
import jax
import jax.numpy as jnp
from jax.experimental import pallas as pl
from jax.experimental.pallas import tpu as pltpu


def _round_up(n, m):
    return ((n + m - 1) // m) * m


def _gelu_tanh(x):
    # tanh-approximate GELU.
    # TODO(synk): PyTorch default nn.GELU uses the exact erf form; erf is not
    # guaranteed to lower in Mosaic, so the tanh approximation is used here.
    c = 0.7978845608028654  # sqrt(2 / pi)
    return 0.5 * x * (1.0 + jnp.tanh(c * (x + 0.044715 * x * x * x)))


def _ffn_cost(M, E, ffn_params, x_itemsize):
    """Advisory CostEstimate numbers for the FFN + logit part."""
    flops = 0
    trans = 0
    prev = E
    for li, (w, _) in enumerate(ffn_params):
        flops += 2 * M * prev * w.shape[1]
        if li > 0:
            trans += M * prev          # GELU on previous layer's output
        prev = w.shape[1]
    trans += M * prev                  # final tanh
    flops += 2 * M * prev              # logit contraction with u
    param_bytes = sum(w.size * w.dtype.itemsize + b.size * b.dtype.itemsize
                      for w, b in ffn_params)
    bytes_accessed = M * E * x_itemsize + param_bytes + 4 * M
    return flops, trans, bytes_accessed


# ---------------------------------------------------------------------------
# Primary path: single fused kernel (x, weights, logits all VMEM-resident).
# ---------------------------------------------------------------------------
def _make_fused_kernel(n_layers, n_groups, group_size):
    A, B = n_groups, group_size

    def kernel(*refs):
        # refs = (x2d, w0, b0, w1, b1, ..., u_row, out)
        x_ref = refs[0]                      # (A*B, E), native dtype
        u_ref = refs[-2]                     # (1, F_last)
        out_ref = refs[-1]                   # (A, E)

        # FFN on all A*B rows at once; no f32 pre-cast of x, f32 accumulation.
        h = x_ref[...]
        for i in range(n_layers):
            w_ref = refs[1 + 2 * i]
            b_ref = refs[2 + 2 * i]
            if i > 0:
                h = _gelu_tanh(h)
                # TODO(synk): nn.Dropout is identity at inference; not applied.
            h = jnp.dot(h, w_ref[...],
                        preferred_element_type=jnp.float32) + b_ref[...]
        h = jnp.tanh(h)

        # Per-row attention logit: (A*B, F_last) * (1, F_last) -> (A*B, 1).
        logits = jnp.sum(h * u_ref[...], axis=-1, keepdims=True)

        # softmax over dim 0 (the A groups of B rows) -- tiny, stays in vregs.
        rows = [logits[a * B:(a + 1) * B] for a in range(A)]     # each (B, 1)
        m = rows[0]
        for r in rows[1:]:
            m = jnp.maximum(m, r)
        exps = [jnp.exp(r - m) for r in rows]
        denom = exps[0]
        for e in exps[1:]:
            denom = denom + e
        inv = 1.0 / denom                                        # (B, 1)

        # Weighted sum over dim 1 (the B rows of each group) -> (A, E).
        for a in range(A):
            att_a = exps[a] * inv                                # (B, 1)
            xa = x_ref[a * B:(a + 1) * B, :].astype(jnp.float32)  # (B, E)
            out_ref[a:a + 1, :] = jnp.sum(
                xa * att_a, axis=0, keepdims=True).astype(out_ref.dtype)

    return kernel


def _att_fusion_fused(x2d, ffn_params, u_row, n_groups, group_size):
    M, E = x2d.shape
    args = [x2d]
    for w, b in ffn_params:
        args.extend((w, b))
    args.append(u_row)

    flops, trans, bytes_acc = _ffn_cost(M, E, ffn_params, x2d.dtype.itemsize)
    flops += 3 * M * E                                   # weighted sum
    bytes_acc += n_groups * E * x2d.dtype.itemsize       # output

    return pl.pallas_call(
        _make_fused_kernel(len(ffn_params), n_groups, group_size),
        out_shape=jax.ShapeDtypeStruct((n_groups, E), x2d.dtype),
        cost_estimate=pl.CostEstimate(
            flops=int(flops), transcendentals=int(trans),
            bytes_accessed=int(bytes_acc)),
    )(*args)


# ---------------------------------------------------------------------------
# Fallback path, kernel 1: row-tiled FFN + attention logit (no padded copy).
# ---------------------------------------------------------------------------
def _make_ffn_logit_kernel(n_layers):
    def kernel(*refs):
        # refs = (x, w0, b0, w1, b1, ..., u, out)
        x_ref = refs[0]
        u_ref = refs[-2]
        out_ref = refs[-1]
        h = x_ref[...]                          # (tile_m, E), native dtype
        for i in range(n_layers):
            w_ref = refs[1 + 2 * i]
            b_ref = refs[2 + 2 * i]
            if i > 0:
                h = _gelu_tanh(h)
            h = jnp.dot(h, w_ref[...],
                        preferred_element_type=jnp.float32) + b_ref[...]
        h = jnp.tanh(h)
        # (tile_m, F_last) * (1, F_last) --lane-reduce--> (tile_m, 1)
        out_ref[...] = jnp.sum(h * u_ref[...], axis=-1, keepdims=True)
    return kernel


def _ffn_logits(x2d, ffn_params, u_row, *, x_block_bytes=6 << 20):
    """x2d: (M, E) -> per-row logits (M, 1) in f32.

    ~6 MiB row blocks (tile_m = 2048 for E = 768 f32) amortize the
    ~0.35 us/step pipeline overhead; two such buffers fit the 32 MiB scoped
    VMEM default on v6e/v7x, and vmem_limit_bytes is raised when the estimate
    exceeds v5e's 16 MiB default.  Ragged last block via a cdiv grid + masked
    stores -- no jnp.pad copy of x.
    """
    M, E = x2d.shape
    itemsize = x2d.dtype.itemsize
    tile_m = max(8, (x_block_bytes // (E * itemsize)) // 8 * 8)
    tile_m = min(tile_m, _round_up(M, 8))
    n_layers = len(ffn_params)

    in_specs = [pl.BlockSpec((tile_m, E), lambda i: (i, 0))]
    args = [x2d]
    for w, b in ffn_params:
        # Weights / biases / u stay VMEM-resident (constant index maps).
        in_specs.append(pl.BlockSpec(w.shape, lambda i: (0, 0)))
        in_specs.append(pl.BlockSpec(b.shape, lambda i: (0, 0)))
        args.extend((w, b))
    in_specs.append(pl.BlockSpec(u_row.shape, lambda i: (0, 0)))
    args.append(u_row)

    param_bytes = sum(a.size * a.dtype.itemsize for a in args[1:])
    vmem_need = 2 * (tile_m * E * itemsize + tile_m * 4 + param_bytes) + (2 << 20)
    vmem_limit = min(vmem_need, 56 << 20) if vmem_need > (16 << 20) else None

    flops, trans, bytes_acc = _ffn_cost(M, E, ffn_params, itemsize)

    logits = pl.pallas_call(
        _make_ffn_logit_kernel(n_layers),
        out_shape=jax.ShapeDtypeStruct((M, 1), jnp.float32),
        grid=(pl.cdiv(M, tile_m),),
        in_specs=in_specs,
        # NOTE: logit output is tiny; kept (tile_m, 1) so the ragged cdiv grid
        # needs no lane-dense reshuffle (review item 9 is low priority here).
        out_specs=pl.BlockSpec((tile_m, 1), lambda i: (i, 0)),
        compiler_params=pltpu.CompilerParams(
            dimension_semantics=("parallel",),
            vmem_limit_bytes=vmem_limit),
        cost_estimate=pl.CostEstimate(
            flops=int(flops), transcendentals=int(trans),
            bytes_accessed=int(bytes_acc)),
    )(*args)
    return logits


# ---------------------------------------------------------------------------
# Fallback path, kernel 2: attention-weighted sum over dim 1, tiled over E.
# ---------------------------------------------------------------------------
def _make_wsum_kernel(n_groups, group_size):
    A, B = n_groups, group_size

    def kernel(att_ref, x_ref, o_ref):
        att = att_ref[...]                                   # (A*B, 1) f32, resident
        for a in range(A):
            xa = x_ref[a * B:(a + 1) * B, :].astype(jnp.float32)   # (B, tile_e)
            o_ref[a:a + 1, :] = jnp.sum(
                xa * att[a * B:(a + 1) * B], axis=0,
                keepdims=True).astype(o_ref.dtype)
    return kernel


def _pick_tile_e(rows, E, itemsize, block_budget):
    # Single lane-dense step when the whole slab fits the per-buffer budget
    # (or E is not 128-aligned); otherwise the largest power-of-two multiple
    # of 128 dividing E that fits.
    if E % 128 != 0 or rows * E * itemsize <= block_budget:
        return E
    tile = E
    while rows * tile * itemsize > block_budget and tile % 256 == 0:
        tile //= 2
    return tile


def _attention_wsum(x2d, att, n_groups, group_size, *, x_block_bytes=4 << 20):
    """x2d: (A*B, E), att: (A*B, 1) f32 -> (A, E)."""
    M, E = x2d.shape
    tile_e = _pick_tile_e(M, E, x2d.dtype.itemsize, x_block_bytes)
    return pl.pallas_call(
        _make_wsum_kernel(n_groups, group_size),
        out_shape=jax.ShapeDtypeStruct((n_groups, E), x2d.dtype),
        grid=(E // tile_e,),
        in_specs=[
            pl.BlockSpec((M, 1), lambda e: (0, 0)),            # att resident
            pl.BlockSpec((M, tile_e), lambda e: (0, e)),
        ],
        # 2-D lane-dense output block (not (A, 1, tile_e)): unmasked stores.
        out_specs=pl.BlockSpec((n_groups, tile_e), lambda e: (0, e)),
        compiler_params=pltpu.CompilerParams(
            dimension_semantics=("parallel",)),
    )(att, x2d)


# ---------------------------------------------------------------------------
# Public forward.
# ---------------------------------------------------------------------------
def att_fusion(x, ffn_params, u, *, fuse_vmem_budget=8 << 20):
    """Pallas forward of AttFusion. x: (A, B, E); u: (F_last, 1) -> (A, E)."""
    A, B, E = x.shape
    x2d = x.reshape(A * B, E)          # merge leading dims: no padded HBM copy
    u_row = u.reshape(1, -1)

    x_bytes = x2d.size * x2d.dtype.itemsize
    param_bytes = sum(w.size * w.dtype.itemsize + b.size * b.dtype.itemsize
                      for w, b in ffn_params) + u.size * u.dtype.itemsize

    if x_bytes + param_bytes <= fuse_vmem_budget:
        # Common case (A=2, B=8, E=768 -> ~48 KB): single fused kernel,
        # x read once, logits never leave VMEM, one dispatch.
        return _att_fusion_fused(x2d, ffn_params, u_row, A, B)

    # Large-input fallback: two tiled streaming kernels.  The tiny dim-0
    # softmax is hoisted out of the per-tile loop (one-shot XLA op) so
    # kernel 2's E grid stays megacore-parallel with zero redundant work.
    logits = _ffn_logits(x2d, ffn_params, u_row)                 # (A*B, 1) f32
    att = jax.nn.softmax(logits.reshape(A, B, 1), axis=0).reshape(A * B, 1)
    return _attention_wsum(x2d, att, A, B)


# ---------------------------------------------------------------------------
# Pure-JAX reference (same semantics as the PyTorch forward, eval mode).
# ---------------------------------------------------------------------------
def att_fusion_ref(x, ffn_params, u):
    h = x
    for i, (w, b) in enumerate(ffn_params):
        if i > 0:
            h = _gelu_tanh(h)          # dropout is identity in eval mode
        h = jnp.matmul(h, w) + b
    h = jnp.tanh(h)
    att = jnp.matmul(h, u)             # (A, B, 1)
    att = jax.nn.softmax(att, axis=0)
    return jnp.sum(x * att, axis=1)


if __name__ == "__main__":
    key = jax.random.PRNGKey(0)
    k_x, k_w0, k_b0, k_w1, k_b1, k_u = jax.random.split(key, 6)

    # Small shapes consistent with the module: dim0=2 (softmax dim),
    # dim1=8 (summed dim), embed_dims=32 (instead of 768), ffn_dims=(16, 8).
    A, B, E = 2, 8, 32
    ffn_dims = (16, 8)

    w0 = jax.random.uniform(k_w0, (E, ffn_dims[0]), jnp.float32, -0.3, 0.3)
    b0 = jax.random.uniform(k_b0, (1, ffn_dims[0]), jnp.float32, -0.3, 0.3)
    w1 = jax.random.uniform(k_w1, (ffn_dims[0], ffn_dims[1]), jnp.float32, -0.3, 0.3)
    b1 = jax.random.uniform(k_b1, (1, ffn_dims[1]), jnp.float32, -0.3, 0.3)
    u = jax.random.uniform(k_u, (ffn_dims[1], 1), dtype=jnp.float32)  # torch.rand-style
    x = jax.random.uniform(k_x, (A, B, E), jnp.float32, -1.0, 1.0)

    ffn_params = [(w0, b0), (w1, b1)]

    ref = att_fusion_ref(x, ffn_params, u)

    # Primary (fused, single-kernel) path.
    out = jax.block_until_ready(att_fusion(x, ffn_params, u))
    assert out.shape == (A, E)
    assert jnp.allclose(out, ref, atol=1e-5, rtol=1e-5), \
        float(jnp.max(jnp.abs(out - ref)))

    # Also exercise the large-input two-pass fallback path on the same data.
    out_split = jax.block_until_ready(
        att_fusion(x, ffn_params, u, fuse_vmem_budget=0))
    assert jnp.allclose(out_split, ref, atol=1e-5, rtol=1e-5), \
        float(jnp.max(jnp.abs(out_split - ref)))

    print("KERNEL_OK")
</pallas_src>

<mosaic_0001>
module attributes {stable_mosaic.version = 11 : i64} {
  func.func @kernel(%arg0: memref<16x32xf32, #tpu.memory_space<vmem>>, %arg1: memref<32x16xf32, #tpu.memory_space<vmem>>, %arg2: memref<1x16xf32, #tpu.memory_space<vmem>>, %arg3: memref<16x8xf32, #tpu.memory_space<vmem>>, %arg4: memref<1x8xf32, #tpu.memory_space<vmem>>, %arg5: memref<1x8xf32, #tpu.memory_space<vmem>>, %arg6: memref<2x32xf32, #tpu.memory_space<vmem>>) attributes {dimension_semantics = [], scalar_prefetch = 0 : i64, scratch_operands = 0 : i64, tpu.core_type = #tpu.core_type<tc>} {
    %c0 = arith.constant 0 : index
    %c0_0 = arith.constant 0 : index
    %0 = vector.load %arg0[%c0, %c0_0] : memref<16x32xf32, #tpu.memory_space<vmem>>, vector<16x32xf32>
    %c0_1 = arith.constant 0 : index
    %c0_2 = arith.constant 0 : index
    %1 = vector.load %arg1[%c0_1, %c0_2] : memref<32x16xf32, #tpu.memory_space<vmem>>, vector<32x16xf32>
    %cst = arith.constant dense<0.000000e+00> : vector<16x16xf32>
    %2 = tpu.matmul %0, %1, %cst {dimension_numbers = #tpu.dot_dimension_numbers<[1], [0], [0], [1], [0, 0, 1, 1], [], []>} : vector<16x32xf32>, vector<32x16xf32>, vector<16x16xf32> -> vector<16x16xf32>
    %c0_3 = arith.constant 0 : index
    %c0_4 = arith.constant 0 : index
    %3 = vector.load %arg2[%c0_3, %c0_4] : memref<1x16xf32, #tpu.memory_space<vmem>>, vector<1x16xf32>
    %4 = vector.broadcast %3 : vector<1x16xf32> to vector<16x16xf32>
    %5 = arith.addf %2, %4 : vector<16x16xf32>
    %cst_5 = arith.constant 5.000000e-01 : f32
    %6 = vector.broadcast %cst_5 : f32 to vector<16x16xf32>
    %7 = arith.mulf %6, %5 : vector<16x16xf32>
    %cst_6 = arith.constant 4.471500e-02 : f32
    %8 = vector.broadcast %cst_6 : f32 to vector<16x16xf32>
    %9 = arith.mulf %8, %5 : vector<16x16xf32>
    %10 = arith.mulf %9, %5 : vector<16x16xf32>
    %11 = arith.mulf %10, %5 : vector<16x16xf32>
    %12 = arith.addf %5, %11 : vector<16x16xf32>
    %cst_7 = arith.constant 0.797884583 : f32
    %13 = vector.broadcast %cst_7 : f32 to vector<16x16xf32>
    %14 = arith.mulf %13, %12 : vector<16x16xf32>
    %15 = math.tanh %14 : vector<16x16xf32>
    %cst_8 = arith.constant 1.000000e+00 : f32
    %16 = vector.broadcast %cst_8 : f32 to vector<16x16xf32>
    %17 = arith.addf %16, %15 : vector<16x16xf32>
    %18 = arith.mulf %7, %17 : vector<16x16xf32>
    %c0_9 = arith.constant 0 : index
    %c0_10 = arith.constant 0 : index
    %19 = vector.load %arg3[%c0_9, %c0_10] : memref<16x8xf32, #tpu.memory_space<vmem>>, vector<16x8xf32>
    %cst_11 = arith.constant dense<0.000000e+00> : vector<16x8xf32>
    %20 = tpu.matmul %18, %19, %cst_11 {dimension_numbers = #tpu.dot_dimension_numbers<[1], [0], [0], [1], [0, 0, 1, 1], [], []>} : vector<16x16xf32>, vector<16x8xf32>, vector<16x8xf32> -> vector<16x8xf32>
    %c0_12 = arith.constant 0 : index
    %c0_13 = arith.constant 0 : index
    %21 = vector.load %arg4[%c0_12, %c0_13] : memref<1x8xf32, #tpu.memory_space<vmem>>, vector<1x8xf32>
    %22 = vector.broadcast %21 : vector<1x8xf32> to vector<16x8xf32>
    %23 = arith.addf %20, %22 : vector<16x8xf32>
    %24 = math.tanh %23 : vector<16x8xf32>
    %c0_14 = arith.constant 0 : index
    %c0_15 = arith.constant 0 : index
    %25 = vector.load %arg5[%c0_14, %c0_15] : memref<1x8xf32, #tpu.memory_space<vmem>>, vector<1x8xf32>
    %26 = vector.broadcast %25 : vector<1x8xf32> to vector<16x8xf32>
    %27 = arith.mulf %24, %26 : vector<16x8xf32>
    %cst_16 = arith.constant dense<0.000000e+00> : vector<16xf32>
    %28 = vector.multi_reduction <add>, %27, %cst_16 [1] : vector<16x8xf32> to vector<16xf32>
    %29 = vector.shape_cast %28 : vector<16xf32> to vector<16x1xf32>
    %30 = vector.extract_strided_slice %29 {offsets = [0, 0], sizes = [8, 1], strides = [1, 1]} : vector<16x1xf32> to vector<8x1xf32>
    %31 = vector.extract_strided_slice %29 {offsets = [8, 0], sizes = [8, 1], strides = [1, 1]} : vector<16x1xf32> to vector<8x1xf32>
    %32 = arith.maximumf %30, %31 : vector<8x1xf32>
    %33 = arith.subf %30, %32 : vector<8x1xf32>
    %34 = math.exp %33 : vector<8x1xf32>
    %35 = arith.subf %31, %32 : vector<8x1xf32>
    %36 = math.exp %35 : vector<8x1xf32>
    %37 = arith.addf %34, %36 : vector<8x1xf32>
    %cst_17 = arith.constant 1.000000e+00 : f32
    %38 = vector.broadcast %cst_17 : f32 to vector<8x1xf32>
    %39 = arith.divf %38, %37 : vector<8x1xf32>
    %40 = arith.mulf %34, %39 : vector<8x1xf32>
    %c0_18 = arith.constant 0 : index
    %c0_19 = arith.constant 0 : index
    %41 = vector.load %arg0[%c0_18, %c0_19] : memref<16x32xf32, #tpu.memory_space<vmem>>, vector<8x32xf32>
    %42 = vector.broadcast %40 : vector<8x1xf32> to vector<8x32xf32>
    %43 = arith.mulf %41, %42 : vector<8x32xf32>
    %cst_20 = arith.constant dense<0.000000e+00> : vector<32xf32>
    %44 = vector.multi_reduction <add>, %43, %cst_20 [0] : vector<8x32xf32> to vector<32xf32>
    %45 = vector.shape_cast %44 : vector<32xf32> to vector<1x32xf32>
    %c0_21 = arith.constant 0 : index
    %c0_22 = arith.constant 0 : index
    %46 = vector.load %arg6[%c0_21, %c0_22] : memref<2x32xf32, #tpu.memory_space<vmem>>, vector<1x32xf32>
    tpu.vector_store %arg6[%c0_21, %c0_22], %45 {strides = array<i32>} : memref<2x32xf32, #tpu.memory_space<vmem>>, vector<1x32xf32>,
    %47 = arith.mulf %36, %39 : vector<8x1xf32>
    %c8 = arith.constant 8 : index
    %c0_23 = arith.constant 0 : index
    %48 = vector.load %arg0[%c8, %c0_23] : memref<16x32xf32, #tpu.memory_space<vmem>>, vector<8x32xf32>
    %49 = vector.broadcast %47 : vector<8x1xf32> to vector<8x32xf32>
    %50 = arith.mulf %48, %49 : vector<8x32xf32>
    %cst_24 = arith.constant dense<0.000000e+00> : vector<32xf32>
    %51 = vector.multi_reduction <add>, %50, %cst_24 [0] : vector<8x32xf32> to vector<32xf32>
    %52 = vector.shape_cast %51 : vector<32xf32> to vector<1x32xf32>
    %c1 = arith.constant 1 : index
    %c0_25 = arith.constant 0 : index
    %53 = vector.load %arg6[%c1, %c0_25] : memref<2x32xf32, #tpu.memory_space<vmem>>, vector<1x32xf32>
    tpu.vector_store %arg6[%c1, %c0_25], %52 {strides = array<i32>} : memref<2x32xf32, #tpu.memory_space<vmem>>, vector<1x32xf32>,
    return
  }
}

</mosaic_0001>

<llo_original>
// kernel: tpu_custom_call.1
$region0: #{tpu_custom_call.1}
  #allocation0 [shape = 'u32[]', space=smem, size = 0x4, offset = 0x4, fixed_abs, tag = 'smem constant byte address 0x4 - core index']
  #allocation1 [shape = 'u32[144,128]{1,0:T(1,128)}', space=vmem, size = 0x12000, scoped, tag = 'internal scratch']
  %s0 = inlined_call_operand.vmem [shape: f32[16,32], index: 0, kind: input, shape index: {}]
  %s1 = inlined_call_operand.vmem [shape: f32[32,16], index: 1, kind: input, shape index: {}]
  %s2 = inlined_call_operand.vmem [shape: f32[1,16], index: 2, kind: input, shape index: {}]
  %s3 = inlined_call_operand.vmem [shape: f32[16,8], index: 3, kind: input, shape index: {}]
  %s4 = inlined_call_operand.vmem [shape: f32[1,8], index: 4, kind: input, shape index: {}]
  %s5 = inlined_call_operand.vmem [shape: f32[1,8], index: 5, kind: input, shape index: {}]
  %s6 = inlined_call_operand.hbm [shape: f32[2,32], index: 6, kind: output, shape index: {}]
  %s7 = sld [smem:[#allocation0]]
  $region34: #{tpu_custom_call.1} parent=0
    _
  %s9 = ssub.s32 1, %s7
  %s10 = scalar_select 0, %s9, %s7
  $region1: #{tpu_custom_call.1} parent=0
    #allocation2 [shape = 'u8[1024]{0}', space=vmem, size = 0x400, scoped, tag = 'output window, operand 0, single buffered']
    #allocation3 [shape = 's32[1]{0}', space=sflag, size = 0x4, scoped, tag = 'scoped memory for tpu_custom_call.1']
    %11 = vsyncpa [#allocation3], 0
    // Predicated region
    $region2: #{tpu_custom_call.1} parent=1 // pred_check
      _
    $region3: #{tpu_custom_call.1} parent=1 // pred_check_branch
      %13 = sbr.rel (0) target = $region5
    $region4: #{tpu_custom_call.1} parent=1 // pred_region
      _
    $region5: #{tpu_custom_call.1} parent=1 // pred_fallthru
      _
    // Predicated region
    $region6: #{tpu_custom_call.1} parent=1 // pred_check
      _
    $region7: #{tpu_custom_call.1} parent=1 // pred_check_branch
      %15 = sbr.rel (0) target = $region9
    $region8: #{tpu_custom_call.1} parent=1 // pred_region
      _
    $region9: #{tpu_custom_call.1} parent=1 // pred_fallthru
      _
    // Predicated region
    $region10: #{tpu_custom_call.1} parent=1 // pred_check
      _
    $region11: #{tpu_custom_call.1} parent=1 // pred_check_branch
      %17 = sbr.rel (0) target = $region13
    $region12: #{tpu_custom_call.1} parent=1 // pred_region
      _
    $region13: #{tpu_custom_call.1} parent=1 // pred_fallthru
      _
    // Predicated region
    $region14: #{tpu_custom_call.1} parent=1 // pred_check
      _
    $region15: #{tpu_custom_call.1} parent=1 // pred_check_branch
      %19 = sbr.rel (0) target = $region17
    $region16: #{tpu_custom_call.1} parent=1 // pred_region
      _
    $region17: #{tpu_custom_call.1} parent=1 // pred_fallthru
      _
    // Predicated region
    $region18: #{tpu_custom_call.1} parent=1 // pred_check
      _
    $region19: #{tpu_custom_call.1} parent=1 // pred_check_branch
      %21 = sbr.rel (0) target = $region21
    $region20: #{tpu_custom_call.1} parent=1 // pred_region
      _
    $region21: #{tpu_custom_call.1} parent=1 // pred_fallthru
      _
    // Predicated region
    $region22: #{tpu_custom_call.1} parent=1 // pred_check
      _
    $region23: #{tpu_custom_call.1} parent=1 // pred_check_branch
      %23 = sbr.rel (0) target = $region25
    $region24: #{tpu_custom_call.1} parent=1 // pred_region
      _
    $region25: #{tpu_custom_call.1} parent=1 // pred_fallthru
      _
    %v24 = vld [vmem:[%s0] sm:$0xff]
    %v25 = vld [vmem:[%s0 + $0x8] sm:$0xff]
    %v26 = vld [vmem:[%s1] sm:$0xff]
    %v27 = vld [vmem:[%s1 + $0x8] sm:$0xff]
    %v28 = vld [vmem:[%s1 + $0x10] sm:$0xff]
    %v29 = vld [vmem:[%s1 + $0x18] sm:$0xff]
    %v30 = vld [vmem:[%s2] sm:$0x1]
    %v32 = vlaneseq
    %v33 = vshrl.u32 %v32, 7
    %v34 = vsub.s32 0, %v33
    %v35 = vrot.slane %v30, %v34
    %vm37 = vcmask 261120
    %v39 = vsel %vm37, %v24, 0
    %v42 = vsel %vm37, %v25, 0
    %44 = vmatprep.subr.mxu0 0.0
    %45 = vmatpush1.msra.mxu0 0.0
    %46 = vmatprep.subr.mxu0 0.0
    %47 = vmatpush1.msra.mxu0 0.0
    %48 = vmatprep.subr.mxu0 0.0
    %49 = vmatpush1.msra.mxu0 0.0
    %50 = vmatprep.subr.mxu0 0.0
    %51 = vmatpush1.msra.mxu0 0.0
    %52 = vmatprep.subr.mxu0 0.0
    %53 = vmatpush1.msra.mxu0 0.0
    %54 = vmatprep.subr.mxu0 0.0
    %55 = vmatpush1.msra.mxu0 0.0
    %56 = vmatprep.subr.mxu0 0.0
    %57 = vmatpush1.msra.mxu0 0.0
    %58 = vmatprep.subr.mxu0 0.0
    %59 = vmatpush1.msra.mxu0 0.0
    %60 = vmatprep.subr.mxu0 0.0
    %61 = vmatpush1.msra.mxu0 0.0
    %62 = vmatprep.subr.mxu0 0.0
    %63 = vmatpush1.msra.mxu0 0.0
    %64 = vmatprep.subr.mxu0 0.0
    %65 = vmatpush1.msra.mxu0 0.0
    %66 = vmatprep.subr.mxu0 0.0
    %67 = vmatpush1.msra.mxu0 0.0
    %68 = vmatprep.subr.mxu0 0.0
    %69 = vmatpush1.msra.mxu0 %v29
    %70 = vmatprep.subr.mxu0 0.0
    %71 = vmatpush1.msra.mxu0 %v28
    %72 = vmatprep.subr.mxu0 0.0
    %73 = vmatpush1.msra.mxu0 %v27
    %74 = vmatprep.subr.mxu0 0.0
    %75 = vmatpush1.msra.mxu0 %v26
    %76 = vmatprep.subr.mxu0 0.0
    %77 = vmatpush2.msra.mxu0 0.0
    %78 = vmatprep.subr.mxu0 0.0
    %79 = vmatpush2.msra.mxu0 0.0
    %80 = vmatprep.subr.mxu0 0.0
    %81 = vmatpush2.msra.mxu0 0.0
    %82 = vmatprep.subr.mxu0 0.0
    %83 = vmatpush2.msra.mxu0 0.0
    %84 = vmatprep.subr.mxu0 0.0
    %85 = vmatpush2.msra.mxu0 0.0
    %86 = vmatprep.subr.mxu0 0.0
    %87 = vmatpush2.msra.mxu0 0.0
    %88 = vmatprep.subr.mxu0 0.0
    %89 = vmatpush2.msra.mxu0 0.0
    %90 = vmatprep.subr.mxu0 0.0
    %91 = vmatpush2.msra.mxu0 0.0
    %92 = vmatprep.subr.mxu0 0.0
    %93 = vmatpush2.msra.mxu0 0.0
    %94 = vmatprep.subr.mxu0 0.0
    %95 = vmatpush2.msra.mxu0 0.0
    %96 = vmatprep.subr.mxu0 0.0
    %97 = vmatpush2.msra.mxu0 0.0
    %98 = vmatprep.subr.mxu0 0.0
    %99 = vmatpush2.msra.mxu0 0.0
    %100 = vmatprep.subr.mxu0 0.0
    %101 = vmatpush2.msra.mxu0 0.0
    %102 = vmatprep.subr.mxu0 0.0
    %103 = vmatpush2.msra.mxu0 0.0
    %104 = vmatprep.subr.mxu0 0.0
    %105 = vmatpush2.msra.mxu0 0.0
    %106 = vmatprep.subr.mxu0 0.0
    %107 = vmatpush2.msra.mxu0 0.0
    %108 = vmatprep.mubr.f32.mxu0 0.0
    %109 = vmatmul.mubr.f32.gmra.mxu0 %v39
    %v110 = vpop.f32.mrf.mxu0
    %v111 = vadd.f32 %v35, %v110
    %v112 = vpop.f32.mrf.mxu0
    %113 = vmatprep.mubr.f32.mxu0 0.0
    %114 = vmatmul.mubr.f32.gmra.mxu0 %v42
    %v115 = vpop.f32.mrf.mxu0
    %v116 = vadd.f32 %v35, %v115
    %v117 = vpop.f32.mrf.mxu0
    %118 = vdwg.mxu0
    %v119 = vmul.f32 %v111, 0.5
    %v120 = vmul.f32 %v116, 0.5
    %v121 = vmul.f32 %v111, 0.044715
    %v122 = vmul.f32 %v116, 0.044715
    %v123 = vmul.f32 %v121, %v111
    %v124 = vmul.f32 %v122, %v116
    %v125 = vmul.f32 %v123, %v111
    %v126 = vmul.f32 %v124, %v116
    %v127 = vadd.f32 %v111, %v125
    %v128 = vadd.f32 %v116, %v126
    %v129 = vmul.f32 %v127, 0.7978846
    %v130 = vmul.f32 %v128, 0.7978846
    %v131 = vtanh.pop %v129
    %v132 = vtanh.pop %v130
    %v133 = vadd.f32 %v131, 1.0
    %v134 = vadd.f32 %v132, 1.0
    %v135 = vmul.f32 %v119, %v133
    %v136 = vmul.f32 %v120, %v134
    %v137 = vld [vmem:[%s3] sm:$0xff]
    %v138 = vld [vmem:[%s3 + $0x8] sm:$0xff]
    %v139 = vld [vmem:[%s4] sm:$0x1]
    %v141 = vlaneseq
    %v142 = vshrl.u32 %v141, 7
    %v143 = vsub.s32 0, %v142
    %v144 = vrot.slane %v139, %v143
    %vm146 = vcmask 130048
    %v148 = vsel %vm146, %v135, 0
    %v151 = vsel %vm146, %v136, 0
    %153 = vmatprep.subr.mxu0 0.0
    %154 = vmatpush1.msra.mxu0 0.0
    %155 = vmatprep.subr.mxu0 0.0
    %156 = vmatpush1.msra.mxu0 0.0
    %157 = vmatprep.subr.mxu0 0.0
    %158 = vmatpush1.msra.mxu0 0.0
    %159 = vmatprep.subr.mxu0 0.0
    %160 = vmatpush1.msra.mxu0 0.0
    %161 = vmatprep.subr.mxu0 0.0
    %162 = vmatpush1.msra.mxu0 0.0
    %163 = vmatprep.subr.mxu0 0.0
    %164 = vmatpush1.msra.mxu0 0.0
    %165 = vmatprep.subr.mxu0 0.0
    %166 = vmatpush1.msra.mxu0 0.0
    %167 = vmatprep.subr.mxu0 0.0
    %168 = vmatpush1.msra.mxu0 0.0
    %169 = vmatprep.subr.mxu0 0.0
    %170 = vmatpush1.msra.mxu0 0.0
    %171 = vmatprep.subr.mxu0 0.0
    %172 = vmatpush1.msra.mxu0 0.0
    %173 = vmatprep.subr.mxu0 0.0
    %174 = vmatpush1.msra.mxu0 0.0
    %175 = vmatprep.subr.mxu0 0.0
    %176 = vmatpush1.msra.mxu0 0.0
    %177 = vmatprep.subr.mxu0 0.0
    %178 = vmatpush1.msra.mxu0 0.0
    %179 = vmatprep.subr.mxu0 0.0
    %180 = vmatpush1.msra.mxu0 0.0
    %181 = vmatprep.subr.mxu0 0.0
    %182 = vmatpush1.msra.mxu0 %v138
    %183 = vmatprep.subr.mxu0 0.0
    %184 = vmatpush1.msra.mxu0 %v137
    %185 = vmatprep.subr.mxu0 0.0
    %186 = vmatpush2.msra.mxu0 0.0
    %187 = vmatprep.subr.mxu0 0.0
    %188 = vmatpush2.msra.mxu0 0.0
    %189 = vmatprep.subr.mxu0 0.0
    %190 = vmatpush2.msra.mxu0 0.0
    %191 = vmatprep.subr.mxu0 0.0
    %192 = vmatpush2.msra.mxu0 0.0
    %193 = vmatprep.subr.mxu0 0.0
    %194 = vmatpush2.msra.mxu0 0.0
    %195 = vmatprep.subr.mxu0 0.0
    %196 = vmatpush2.msra.mxu0 0.0
    %197 = vmatprep.subr.mxu0 0.0
    %198 = vmatpush2.msra.mxu0 0.0
    %199 = vmatprep.subr.mxu0 0.0
    %200 = vmatpush2.msra.mxu0 0.0
    %201 = vmatprep.subr.mxu0 0.0
    %202 = vmatpush2.msra.mxu0 0.0
    %203 = vmatprep.subr.mxu0 0.0
    %204 = vmatpush2.msra.mxu0 0.0
    %205 = vmatprep.subr.mxu0 0.0
    %206 = vmatpush2.msra.mxu0 0.0
    %207 = vmatprep.subr.mxu0 0.0
    %208 = vmatpush2.msra.mxu0 0.0
    %209 = vmatprep.subr.mxu0 0.0
    %210 = vmatpush2.msra.mxu0 0.0
    %211 = vmatprep.subr.mxu0 0.0
    %212 = vmatpush2.msra.mxu0 0.0
    %213 = vmatprep.subr.mxu0 0.0
    %214 = vmatpush2.msra.mxu0 0.0
    %215 = vmatprep.subr.mxu0 0.0
    %216 = vmatpush2.msra.mxu0 0.0
    %217 = vmatprep.mubr.f32.mxu0 0.0
    %218 = vmatmul.mubr.f32.gmra.mxu0 %v148
    %v219 = vpop.f32.mrf.mxu0
    %v220 = vadd.f32 %v144, %v219
    %v221 = vpop.f32.mrf.mxu0
    %222 = vmatprep.mubr.f32.mxu0 0.0
    %223 = vmatmul.mubr.f32.gmra.mxu0 %v151
    %v224 = vpop.f32.mrf.mxu0
    %v225 = vadd.f32 %v144, %v224
    %v226 = vpop.f32.mrf.mxu0
    %227 = vdwg.mxu0
    %v228 = vtanh.pop %v220
    %v229 = vtanh.pop %v225
    %v230 = vld [vmem:[%s5] sm:$0x1]
    %v232 = vlaneseq
    %v233 = vshrl.u32 %v232, 7
    %v234 = vsub.s32 0, %v233
    %v235 = vrot.slane %v230, %v234
    %v237 = vmul.f32 %v228, %v235
    %v238 = vmul.f32 %v229, %v235
    %vm239 = vcmask 64512
    %v240 = vsel %vm239, %v237, 0.0
    %241 = vadd.xlane.f32.xlu0 %v240
    %v242 = vpop.xlane.xlu0 %241
    %v243 = vsel %vm239, %v238, 0.0
    %244 = vadd.xlane.f32.xlu0 %v243
    %v245 = vpop.xlane.xlu0 %244
    %v246 = vmax.f32 %v242, %v245
    %v247 = vsub.f32 %v242, %v246
    %v248 = vmul.f32 %v247, 1.442695
    %v249 = vpow.pop %v248
    %v250 = vsub.f32 %v245, %v246
    %v251 = vmul.f32 %v250, 1.442695
    %v252 = vpow.pop %v251
    %v253 = vadd.f32 %v249, %v252
    %v254 = vrcp.pop %v253
    %v255 = vmul.f32 1.0, %v254
    %v256 = vmul.f32 %v249, %v255
    %v257 = vld [vmem:[%s0] sm:$0xff]
    %v258 = vmul.f32 %v257, %v256
    %v259 = vsel %vm37, %v258, 0.0
    %v260 = vrot.slane %v259, 4
    %v261 = vadd.f32 %v259, %v260
    %v262 = vrot.slane %v261, 2
    %v263 = vadd.f32 %v261, %v262
    %v264 = vrot.slane %v263, 1
    %v265 = vadd.f32 %v263, %v264
    %vm266 = vcmask 253952
    %267 = vst.msk [vmem:[#allocation2] sm:$0x1] %vm266, %v265
    %v268 = vmul.f32 %v252, %v255
    %v269 = vld [vmem:[%s0 + $0x8] sm:$0xff]
    %v270 = vmul.f32 %v269, %v268
    %v271 = vsel %vm37, %v270, 0.0
    %v272 = vrot.slane %v271, 4
    %v273 = vadd.f32 %v271, %v272
    %v274 = vrot.slane %v273, 2
    %v275 = vadd.f32 %v273, %v274
    %v276 = vrot.slane %v275, 1
    %v277 = vadd.f32 %v275, %v276
    %278 = vst.msk [vmem:[#allocation2 + $0x1] sm:$0x1] %vm266, %v277
    // Predicated region
    $region26: #{tpu_custom_call.1} parent=1 // pred_check
      _
    $region27: #{tpu_custom_call.1} parent=1 // pred_check_branch
      %280 = sbr.rel (0) target = $region29
    $region28: #{tpu_custom_call.1} parent=1 // pred_region
      %s282 = ssub.s32 32, 32
      %283 = vsyncadd [#allocation3], %s282
      %s285 = sshll.u32 [#allocation2], 4
      %s286 = int_to_ptr.vmem [resolvable:$true] %s285
      %288 = dma.vmem_to_hbm [thread:$0]  %s286, 32, %s6, [#allocation3]
    $region29: #{tpu_custom_call.1} parent=1 // pred_fallthru
      _
    // Predicated region
    $region30: #{tpu_custom_call.1} parent=1 // pred_check
      _
    $region31: #{tpu_custom_call.1} parent=1 // pred_check_branch
      %290 = sbr.rel (0) target = $region33
    $region32: #{tpu_custom_call.1} parent=1 // pred_region
      %291 = dma.done [#allocation3], 32
    $region33: #{tpu_custom_call.1} parent=1 // pred_fallthru
      _
    %292 = vsyncpa [#allocation3], 1

</llo_original>
